<compile_context>
chip_gen: v6e
topology: v6e:2x2x1
jax: 0.10.0
libtpu: 0.0.40
codegen_flags: <defaults>
</compile_context>

<pallas_src>
import jax
import jax.numpy as jnp
from jax.experimental import pallas as pl
from jax.experimental.pallas import tpu as pltpu


# -----------------------------------------------------------------------------
# Kernel
# -----------------------------------------------------------------------------
def _make_kernel(n_layers):
    """Kernel over refs: (xr, xi, W1_top, W1_bot, b1, W2, b2, ..., WL, bL, out).

    xr, xi : [TB, F]            real / imag activations (f32 or bf16)
    W1_top : [F, 2*H1]          [Wr1^T | Wi1^T]
    W1_bot : [F, 2*H1]          [-Wi1^T | Wr1^T]
    W_l    : [2*in_l, 2*out_l]  block-matrix complex weight (l >= 2)
    b_l    : [1, 2*out_l]       [br | bi] (f32; b1 has the freq-encoding fold)
    out    : [TB, 1]            |complex output| of the final ComplexLinear(H, 1)
    """

    def kernel(xr_ref, xi_ref, *refs):
        out_ref = refs[-1]
        params = refs[:-1]

        w1t = params[0][...]
        w1b = params[1][...]
        b1 = params[2][...]

        xr = xr_ref[...]
        xi = xi_ref[...]
        if xr.dtype != w1t.dtype:          # bf16 weights with f32 inputs (or vice versa)
            xr = xr.astype(w1t.dtype)
            xi = xi.astype(w1t.dtype)

        h = (jnp.dot(xr, w1t, preferred_element_type=jnp.float32)
             + jnp.dot(xi, w1b, preferred_element_type=jnp.float32)
             + b1)
        if n_layers > 1:
            h = jnp.maximum(h, 0.0)        # CReLU on the whole [TB, 2H] block

        idx = 3
        for layer in range(1, n_layers):
            w = params[idx][...]
            b = params[idx + 1][...]
            idx += 2
            lhs = h.astype(w.dtype) if h.dtype != w.dtype else h
            h = jnp.dot(lhs, w, preferred_element_type=jnp.float32) + b
            if layer < n_layers - 1:
                h = jnp.maximum(h, 0.0)

        # Final h is [TB, P] with columns (real, imag, 0, ..., 0) -> complex abs.
        out_ref[...] = jnp.sqrt(
            jnp.sum(h * h, axis=-1, keepdims=True)).astype(out_ref.dtype)

    return kernel


# -----------------------------------------------------------------------------
# One-time parameter preparation (hoisted out of the per-call path)
# -----------------------------------------------------------------------------
def prepare_params(raw_params, n_features, *, use_bf16_matmul=False,
                   final_pad_cols=8):
    """Pack raw (PyTorch-layout) parameters into the kernel's block layout.

    Call once and cache; the forward path does no weight transposes / casts.
    """
    fe_weight, hidden_layers, out_layer = raw_params

    # frequency_encoding_complex (real == imag part): fe[j] = (0.1*j + 3) / (0.1*(F-1) + 3)
    arr_freq = jnp.arange(0, n_features, dtype=jnp.float32) * 0.1 + 3.0
    fe = arr_freq / arr_freq[-1]
    off = (fe_weight[0] * fe)[None, :]                              # [1, F]

    layers = list(hidden_layers) + [out_layer]
    n_layers = len(layers)

    prepped = []
    for li, (wr, wi, br, bi) in enumerate(layers):
        top = jnp.concatenate([wr.T, wi.T], axis=1)                 # [in, 2*out]
        bot = jnp.concatenate([-wi.T, wr.T], axis=1)                # [in, 2*out]
        bb = jnp.concatenate([br, bi])[None, :]                     # [1, 2*out]

        if li == n_layers - 1 and final_pad_cols > bb.shape[1]:
            # Pad only the degenerate final output dim (2 -> 8) with zero columns.
            pad = final_pad_cols - bb.shape[1]
            top = jnp.pad(top, ((0, 0), (0, pad)))
            bot = jnp.pad(bot, ((0, 0), (0, pad)))
            bb = jnp.pad(bb, ((0, 0), (0, pad)))

        if li == 0:
            # Fold the input frequency-encoding add into the first bias:
            #   (x + c) @ W + b == x @ W + (c @ W + b)   (done in f32 before any cast)
            bb = bb + off @ top + off @ bot
            if use_bf16_matmul:
                top = top.astype(jnp.bfloat16)
                bot = bot.astype(jnp.bfloat16)
            prepped += [top, bot, bb]                               # first layer split
        else:
            wb = jnp.concatenate([top, bot], axis=0)                # [2*in, 2*out]
            if use_bf16_matmul:
                wb = wb.astype(jnp.bfloat16)
            prepped += [wb, bb]
    return tuple(prepped)


# -----------------------------------------------------------------------------
# Forward
# -----------------------------------------------------------------------------
def _batch_tiling(B, tb_max, single_block_max):
    """Pick (tb, b_padded). Guarantees an even number of >=2 grid steps once the
    batch is big enough to be worth sharding across v7x's two TensorCores."""
    if B <= single_block_max:
        return B, B                               # single full-array block
    n_tiles = max(2, -(-B // tb_max))             # >= 2 steps
    if n_tiles % 2:
        n_tiles += 1                              # even -> both TCs equally loaded
    tb = ((-(-B // n_tiles) + 7) // 8) * 8        # multiple of 8 (sublane tile)
    return tb, tb * n_tiles


def nn_complex_fe_forward(xr, xi, prepped_params, *, tb_max=2048,
                          single_block_max=512, use_bf16_matmul=False,
                          vmem_limit_bytes=None):
    """xr, xi: [B, n_features] float32 real/imag parts of the complex input.

    tb_max: batch tile.  2048 is safe everywhere; sweep up to ~8192.  On v5e
    (16 MiB default scoped VMEM) keep tb_max <= 8192 or pass vmem_limit_bytes.
    """
    B, F = xr.shape
    n_layers = (len(prepped_params) - 1) // 2

    if use_bf16_matmul:
        # Stream activations at half the HBM bytes; accumulation stays f32.
        xr = xr.astype(jnp.bfloat16)
        xi = xi.astype(jnp.bfloat16)

    tb, b_padded = _batch_tiling(B, tb_max, single_block_max)
    if b_padded != B:
        pad = b_padded - B
        xr = jnp.pad(xr, ((0, pad), (0, 0)))
        xi = jnp.pad(xi, ((0, pad), (0, 0)))
    grid = (b_padded // tb,)

    in_specs = [pl.BlockSpec((tb, F), lambda i: (i, 0)),
                pl.BlockSpec((tb, F), lambda i: (i, 0))]
    for p in prepped_params:
        # Full array, constant index_map -> loaded once, VMEM-resident across the grid.
        in_specs.append(pl.BlockSpec(p.shape, lambda i: (0, 0)))
    out_specs = pl.BlockSpec((tb, 1), lambda i: (i, 0))
    # TODO(synk): a lane-dense (1, tb) output layout would avoid masked vst.msk stores;
    # skipped here because the needed column->row relayout buys ~nothing at this output size.

    # Advisory cost estimate so XLA can overlap neighbours with this short kernel.
    x_bytes = xr.size * xr.dtype.itemsize + xi.size * xi.dtype.itemsize
    p_bytes = sum(int(p.size) * p.dtype.itemsize for p in prepped_params)
    flops = 2 * b_padded * (
        2 * prepped_params[0].shape[0] * prepped_params[0].shape[1]
        + sum(int(prepped_params[i].shape[0] * prepped_params[i].shape[1])
              for i in range(3, len(prepped_params), 2)))
    cost = pl.CostEstimate(flops=int(flops), transcendentals=int(b_padded),
                           bytes_accessed=int(x_bytes + p_bytes + b_padded * 4))

    out = pl.pallas_call(
        _make_kernel(n_layers),
        out_shape=jax.ShapeDtypeStruct((b_padded, 1), jnp.float32),
        grid=grid,
        in_specs=in_specs,
        out_specs=out_specs,
        compiler_params=pltpu.CompilerParams(
            # batch axis is embarrassingly parallel -> shard across v7x's 2 TensorCores
            dimension_semantics=("parallel",),
            vmem_limit_bytes=vmem_limit_bytes,
        ),
        cost_estimate=cost,
    )(xr, xi, *prepped_params)
    return out[:B]


# -----------------------------------------------------------------------------
# Pure-JAX reference (straightforward, un-fused math on the raw parameters)
# -----------------------------------------------------------------------------
def _ref_forward(xr, xi, raw_params):
    fe_weight, hidden_layers, out_layer = raw_params
    F = xr.shape[1]
    arr_freq = jnp.arange(0, F, dtype=jnp.float32) * 0.1 + 3.0
    fe = arr_freq / arr_freq[-1]
    off = (fe_weight[0] * fe)[None, :]
    xr = xr + off
    xi = xi + off
    for (wr, wi, br, bi) in hidden_layers:
        yr = xr @ wr.T - xi @ wi.T + br
        yi = xr @ wi.T + xi @ wr.T + bi
        xr, xi = jnp.maximum(yr, 0.0), jnp.maximum(yi, 0.0)
    wr, wi, br, bi = out_layer
    yr = xr @ wr.T - xi @ wi.T + br
    yi = xr @ wi.T + xi @ wr.T + bi
    return jnp.sqrt(yr * yr + yi * yi)


# -----------------------------------------------------------------------------
# Deterministic parameter init (PyTorch Linear shapes: W [out, in], b [out])
# -----------------------------------------------------------------------------
def init_raw_params(key, n_features, list_hidden):
    key, kw = jax.random.split(key)
    fe_weight = jax.random.normal(kw, (1, n_features), jnp.float32)   # self.weight

    dims = [n_features] + list(list_hidden) + [1]
    layers = []
    for i in range(len(dims) - 1):
        fan_in, fan_out = dims[i], dims[i + 1]
        key, k1, k2, k3, k4 = jax.random.split(key, 5)
        s = 1.0 / jnp.sqrt(fan_in)
        layers.append((
            jax.random.uniform(k1, (fan_out, fan_in), jnp.float32, -s, s),  # Wr
            jax.random.uniform(k2, (fan_out, fan_in), jnp.float32, -s, s),  # Wi
            jax.random.uniform(k3, (fan_out,), jnp.float32, -s, s),         # br
            jax.random.uniform(k4, (fan_out,), jnp.float32, -s, s),         # bi
        ))
    hidden_layers, out_layer = layers[:-1], layers[-1]
    return (fe_weight, hidden_layers, out_layer)


if __name__ == "__main__":
    n_features = 32
    list_hidden = [32, 32]
    # TODO(synk): activation_fn is a constructor argument in the PyTorch module;
    # CReLU (the standard complexPyTorch choice) is baked in here.

    key = jax.random.PRNGKey(0)
    key, kx, ki = jax.random.split(key, 3)

    raw_params = init_raw_params(key, n_features, list_hidden)
    # One-time prep (cache this outside the hot path in real use).
    prepped = jax.tree.map(jax.block_until_ready,
                           prepare_params(raw_params, n_features))

    # 1) Small batch: single full-array block path.
    B = 8
    xr = jax.random.normal(kx, (B, n_features), jnp.float32)
    xi = jax.random.normal(ki, (B, n_features), jnp.float32)
    out = jax.block_until_ready(nn_complex_fe_forward(xr, xi, prepped))
    ref = _ref_forward(xr, xi, raw_params)
    assert out.shape == (B, 1)
    assert jnp.allclose(out, ref, atol=1e-4, rtol=1e-4)

    # 2) Larger, non-multiple-of-8 batch: exercises padding + even multi-tile
    #    (megacore-parallel) path.
    B2 = 1030
    key, kx2, ki2 = jax.random.split(key, 3)
    xr2 = jax.random.normal(kx2, (B2, n_features), jnp.float32)
    xi2 = jax.random.normal(ki2, (B2, n_features), jnp.float32)
    out2 = jax.block_until_ready(nn_complex_fe_forward(xr2, xi2, prepped))
    ref2 = _ref_forward(xr2, xi2, raw_params)
    assert out2.shape == (B2, 1)
    assert jnp.allclose(out2, ref2, atol=1e-4, rtol=1e-4)

    print("KERNEL_OK")
</pallas_src>

<mosaic_0001>
module attributes {stable_mosaic.version = 11 : i64} {
  func.func @kernel(%arg0: i32, %arg1: memref<8x32xf32, #tpu.memory_space<vmem>>, %arg2: memref<8x32xf32, #tpu.memory_space<vmem>>, %arg3: memref<32x64xf32, #tpu.memory_space<vmem>>, %arg4: memref<32x64xf32, #tpu.memory_space<vmem>>, %arg5: memref<1x64xf32, #tpu.memory_space<vmem>>, %arg6: memref<64x64xf32, #tpu.memory_space<vmem>>, %arg7: memref<1x64xf32, #tpu.memory_space<vmem>>, %arg8: memref<64x8xf32, #tpu.memory_space<vmem>>, %arg9: memref<1x8xf32, #tpu.memory_space<vmem>>, %arg10: memref<8x1xf32, #tpu.memory_space<vmem>>) attributes {dimension_semantics = [#tpu.dimension_semantics<parallel>], iteration_bounds = array<i64: 1>, scalar_prefetch = 0 : i64, scratch_operands = 0 : i64, tpu.core_type = #tpu.core_type<tc>, window_params = [{transform_indices = @transform_0, window_bounds = array<i64: 8, 32>}, {transform_indices = @transform_1, window_bounds = array<i64: 8, 32>}, {pipeline_mode = #tpu.pipeline_mode<synchronous>, transform_indices = @transform_2, window_bounds = array<i64: 32, 64>}, {pipeline_mode = #tpu.pipeline_mode<synchronous>, transform_indices = @transform_3, window_bounds = array<i64: 32, 64>}, {pipeline_mode = #tpu.pipeline_mode<synchronous>, transform_indices = @transform_4, window_bounds = array<i64: 1, 64>}, {pipeline_mode = #tpu.pipeline_mode<synchronous>, transform_indices = @transform_5, window_bounds = array<i64: 64, 64>}, {pipeline_mode = #tpu.pipeline_mode<synchronous>, transform_indices = @transform_6, window_bounds = array<i64: 1, 64>}, {pipeline_mode = #tpu.pipeline_mode<synchronous>, transform_indices = @transform_7, window_bounds = array<i64: 64, 8>}, {pipeline_mode = #tpu.pipeline_mode<synchronous>, transform_indices = @transform_8, window_bounds = array<i64: 1, 8>}, {transform_indices = @transform_9, window_bounds = array<i64: 8, 1>}]} {
    %c0 = arith.constant 0 : index
    %c0_0 = arith.constant 0 : index
    %0 = vector.load %arg3[%c0, %c0_0] : memref<32x64xf32, #tpu.memory_space<vmem>>, vector<32x64xf32>
    %c0_1 = arith.constant 0 : index
    %c0_2 = arith.constant 0 : index
    %1 = vector.load %arg4[%c0_1, %c0_2] : memref<32x64xf32, #tpu.memory_space<vmem>>, vector<32x64xf32>
    %c0_3 = arith.constant 0 : index
    %c0_4 = arith.constant 0 : index
    %2 = vector.load %arg5[%c0_3, %c0_4] : memref<1x64xf32, #tpu.memory_space<vmem>>, vector<1x64xf32>
    %c0_5 = arith.constant 0 : index
    %c0_6 = arith.constant 0 : index
    %3 = vector.load %arg1[%c0_5, %c0_6] : memref<8x32xf32, #tpu.memory_space<vmem>>, vector<8x32xf32>
    %c0_7 = arith.constant 0 : index
    %c0_8 = arith.constant 0 : index
    %4 = vector.load %arg2[%c0_7, %c0_8] : memref<8x32xf32, #tpu.memory_space<vmem>>, vector<8x32xf32>
    %cst = arith.constant dense<0.000000e+00> : vector<8x64xf32>
    %5 = tpu.matmul %3, %0, %cst {dimension_numbers = #tpu.dot_dimension_numbers<[1], [0], [0], [1], [0, 0, 1, 1], [], []>} : vector<8x32xf32>, vector<32x64xf32>, vector<8x64xf32> -> vector<8x64xf32>
    %cst_9 = arith.constant dense<0.000000e+00> : vector<8x64xf32>
    %6 = tpu.matmul %4, %1, %cst_9 {dimension_numbers = #tpu.dot_dimension_numbers<[1], [0], [0], [1], [0, 0, 1, 1], [], []>} : vector<8x32xf32>, vector<32x64xf32>, vector<8x64xf32> -> vector<8x64xf32>
    %7 = arith.addf %5, %6 : vector<8x64xf32>
    %8 = vector.broadcast %2 : vector<1x64xf32> to vector<8x64xf32>
    %9 = arith.addf %7, %8 : vector<8x64xf32>
    %cst_10 = arith.constant 0.000000e+00 : f32
    %10 = vector.broadcast %cst_10 : f32 to vector<8x64xf32>
    %11 = arith.maximumf %9, %10 : vector<8x64xf32>
    %c0_11 = arith.constant 0 : index
    %c0_12 = arith.constant 0 : index
    %12 = vector.load %arg6[%c0_11, %c0_12] : memref<64x64xf32, #tpu.memory_space<vmem>>, vector<64x64xf32>
    %c0_13 = arith.constant 0 : index
    %c0_14 = arith.constant 0 : index
    %13 = vector.load %arg7[%c0_13, %c0_14] : memref<1x64xf32, #tpu.memory_space<vmem>>, vector<1x64xf32>
    %cst_15 = arith.constant dense<0.000000e+00> : vector<8x64xf32>
    %14 = tpu.matmul %11, %12, %cst_15 {dimension_numbers = #tpu.dot_dimension_numbers<[1], [0], [0], [1], [0, 0, 1, 1], [], []>} : vector<8x64xf32>, vector<64x64xf32>, vector<8x64xf32> -> vector<8x64xf32>
    %15 = vector.broadcast %13 : vector<1x64xf32> to vector<8x64xf32>
    %16 = arith.addf %14, %15 : vector<8x64xf32>
    %cst_16 = arith.constant 0.000000e+00 : f32
    %17 = vector.broadcast %cst_16 : f32 to vector<8x64xf32>
    %18 = arith.maximumf %16, %17 : vector<8x64xf32>
    %c0_17 = arith.constant 0 : index
    %c0_18 = arith.constant 0 : index
    %19 = vector.load %arg8[%c0_17, %c0_18] : memref<64x8xf32, #tpu.memory_space<vmem>>, vector<64x8xf32>
    %c0_19 = arith.constant 0 : index
    %c0_20 = arith.constant 0 : index
    %20 = vector.load %arg9[%c0_19, %c0_20] : memref<1x8xf32, #tpu.memory_space<vmem>>, vector<1x8xf32>
    %cst_21 = arith.constant dense<0.000000e+00> : vector<8x8xf32>
    %21 = tpu.matmul %18, %19, %cst_21 {dimension_numbers = #tpu.dot_dimension_numbers<[1], [0], [0], [1], [0, 0, 1, 1], [], []>} : vector<8x64xf32>, vector<64x8xf32>, vector<8x8xf32> -> vector<8x8xf32>
    %22 = vector.broadcast %20 : vector<1x8xf32> to vector<8x8xf32>
    %23 = arith.addf %21, %22 : vector<8x8xf32>
    %24 = arith.mulf %23, %23 : vector<8x8xf32>
    %cst_22 = arith.constant dense<0.000000e+00> : vector<8xf32>
    %25 = vector.multi_reduction <add>, %24, %cst_22 [1] : vector<8x8xf32> to vector<8xf32>
    %26 = vector.shape_cast %25 : vector<8xf32> to vector<8x1xf32>
    %27 = math.sqrt %26 : vector<8x1xf32>
    %c0_23 = arith.constant 0 : index
    %c0_24 = arith.constant 0 : index
    %28 = vector.load %arg10[%c0_23, %c0_24] : memref<8x1xf32, #tpu.memory_space<vmem>>, vector<8x1xf32>
    tpu.vector_store %arg10[%c0_23, %c0_24], %27 {strides = array<i32>} : memref<8x1xf32, #tpu.memory_space<vmem>>, vector<8x1xf32>,
    return
  }
  func.func @transform_0(%arg0: i32) -> (i32, i32) {
    %c0_i32 = arith.constant 0 : i32
    %c0_i32_0 = arith.constant 0 : i32
    return %arg0, %c0_i32 : i32, i32
  }
  func.func @transform_1(%arg0: i32) -> (i32, i32) {
    %c0_i32 = arith.constant 0 : i32
    %c0_i32_0 = arith.constant 0 : i32
    return %arg0, %c0_i32 : i32, i32
  }
  func.func @transform_2(%arg0: i32) -> (i32, i32) {
    %c0_i32 = arith.constant 0 : i32
    %c0_i32_0 = arith.constant 0 : i32
    %c0_i32_1 = arith.constant 0 : i32
    return %c0_i32, %c0_i32_0 : i32, i32
  }
  func.func @transform_3(%arg0: i32) -> (i32, i32) {
    %c0_i32 = arith.constant 0 : i32
    %c0_i32_0 = arith.constant 0 : i32
    %c0_i32_1 = arith.constant 0 : i32
    return %c0_i32, %c0_i32_0 : i32, i32
  }
  func.func @transform_4(%arg0: i32) -> (i32, i32) {
    %c0_i32 = arith.constant 0 : i32
    %c0_i32_0 = arith.constant 0 : i32
    %c0_i32_1 = arith.constant 0 : i32
    return %c0_i32, %c0_i32_0 : i32, i32
  }
  func.func @transform_5(%arg0: i32) -> (i32, i32) {
    %c0_i32 = arith.constant 0 : i32
    %c0_i32_0 = arith.constant 0 : i32
    %c0_i32_1 = arith.constant 0 : i32
    return %c0_i32, %c0_i32_0 : i32, i32
  }
  func.func @transform_6(%arg0: i32) -> (i32, i32) {
    %c0_i32 = arith.constant 0 : i32
    %c0_i32_0 = arith.constant 0 : i32
    %c0_i32_1 = arith.constant 0 : i32
    return %c0_i32, %c0_i32_0 : i32, i32
  }
  func.func @transform_7(%arg0: i32) -> (i32, i32) {
    %c0_i32 = arith.constant 0 : i32
    %c0_i32_0 = arith.constant 0 : i32
    %c0_i32_1 = arith.constant 0 : i32
    return %c0_i32, %c0_i32_0 : i32, i32
  }
  func.func @transform_8(%arg0: i32) -> (i32, i32) {
    %c0_i32 = arith.constant 0 : i32
    %c0_i32_0 = arith.constant 0 : i32
    %c0_i32_1 = arith.constant 0 : i32
    return %c0_i32, %c0_i32_0 : i32, i32
  }
  func.func @transform_9(%arg0: i32) -> (i32, i32) {
    %c0_i32 = arith.constant 0 : i32
    %c0_i32_0 = arith.constant 0 : i32
    return %arg0, %c0_i32 : i32, i32
  }
}

</mosaic_0001>

<llo_original>
// kernel: tpu_custom_call.1
$region0: #{tpu_custom_call.1}
  #allocation0 [shape = 'u32[]', space=smem, size = 0x4, offset = 0x4, fixed_abs, tag = 'smem constant byte address 0x4 - core index']
  #allocation1 [shape = 'u32[144,128]{1,0:T(1,128)}', space=vmem, size = 0x12000, scoped, tag = 'internal scratch']
  %s0 = inlined_call_operand.vmem [shape: f32[8,32], index: 0, kind: input, shape index: {}]
  %s1 = inlined_call_operand.hbm [shape: f32[8,32], index: 1, kind: input, shape index: {}]
  %s2 = inlined_call_operand.hbm [shape: f32[32,64], index: 2, kind: input, shape index: {}]
  %s3 = inlined_call_operand.hbm [shape: f32[32,64], index: 3, kind: input, shape index: {}]
  %s4 = inlined_call_operand.vmem [shape: f32[1,64], index: 4, kind: input, shape index: {}]
  %s5 = inlined_call_operand.vmem [shape: f32[64,64], index: 5, kind: input, shape index: {}]
  %s6 = inlined_call_operand.vmem [shape: f32[1,64], index: 6, kind: input, shape index: {}]
  %s7 = inlined_call_operand.vmem [shape: f32[64,8], index: 7, kind: input, shape index: {}]
  %s8 = inlined_call_operand.vmem [shape: f32[1,8], index: 8, kind: input, shape index: {}]
  %s9 = inlined_call_operand.vmem [shape: f32[8,1], index: 9, kind: output, shape index: {}]
  %s10 = sld [smem:[#allocation0]]
  $region58: #{tpu_custom_call.1} parent=0
    _
  %s12 = ssub.s32 1, %s10
  %s13 = scalar_select 0, %s12, %s10
  $region1: #{tpu_custom_call.1} parent=0
    #allocation2 [shape = 'u8[4096]{0}', space=vmem, size = 0x1000, scoped, tag = 'input window, operand 1, single buffered']
    #allocation3 [shape = 's32[1]{0}', space=sflag, size = 0x4, scoped, tag = 'scoped memory for tpu_custom_call.1']
    #allocation4 [shape = 'u8[16384]{0}', space=vmem, size = 0x4000, scoped, tag = 'input window, operand 2, single buffered']
    #allocation5 [shape = 's32[1]{0}', space=sflag, size = 0x4, scoped, tag = 'scoped memory for tpu_custom_call.1']
    #allocation6 [shape = 'u8[16384]{0}', space=vmem, size = 0x4000, scoped, tag = 'input window, operand 3, single buffered']
    %14 = vsyncpa [#allocation3], 0
    %15 = vsyncpa [#allocation5], 0
    // Predicated region
    $region2: #{tpu_custom_call.1} parent=1 // pred_check
      _
    $region3: #{tpu_custom_call.1} parent=1 // pred_check_branch
      %17 = sbr.rel (0) target = $region5
    $region4: #{tpu_custom_call.1} parent=1 // pred_region
      _
    $region5: #{tpu_custom_call.1} parent=1 // pred_fallthru
      _
    // Predicated region
    $region6: #{tpu_custom_call.1} parent=1 // pred_check
      _
    $region7: #{tpu_custom_call.1} parent=1 // pred_check_branch
      %19 = sbr.rel (0) target = $region9
    $region8: #{tpu_custom_call.1} parent=1 // pred_region
      %s21 = ssub.s32 128, 128
      %22 = vsyncadd [#allocation3], %s21
      %s24 = sshll.u32 [#allocation2], 4
      %s25 = int_to_ptr.vmem [resolvable:$true] %s24
      %27 = dma.hbm_to_vmem [thread:$0]  %s1, 128, %s25, [#allocation3]
    $region9: #{tpu_custom_call.1} parent=1 // pred_fallthru
      _
    // Predicated region
    $region10: #{tpu_custom_call.1} parent=1 // pred_check
      _
    $region11: #{tpu_custom_call.1} parent=1 // pred_check_branch
      %29 = sbr.rel (0) target = $region13
    $region12: #{tpu_custom_call.1} parent=1 // pred_region
      %s31 = ssub.s32 512, 512
      %32 = vsyncadd [#allocation5], %s31
      %s33 = sshll.u32 [#allocation4], 4
      %s34 = int_to_ptr.vmem [resolvable:$true] %s33
      %39 = dma.hbm_to_vmem [thread:$0]  %s2, 512, %s34, [#allocation5], 128, 128, 8
    $region13: #{tpu_custom_call.1} parent=1 // pred_fallthru
      _
    // Predicated region
    $region14: #{tpu_custom_call.1} parent=1 // pred_check
      _
    $region15: #{tpu_custom_call.1} parent=1 // pred_check_branch
      %41 = sbr.rel (0) target = $region17
    $region16: #{tpu_custom_call.1} parent=1 // pred_region
      %s43 = ssub.s32 512, 512
      %44 = vsyncadd [#allocation5], %s43
      %s45 = sshll.u32 [#allocation6], 4
      %s46 = int_to_ptr.vmem [resolvable:$true] %s45
      %51 = dma.hbm_to_vmem [thread:$0]  %s3, 512, %s46, [#allocation5], 128, 128, 8
    $region17: #{tpu_custom_call.1} parent=1 // pred_fallthru
      _
    // Predicated region
    $region18: #{tpu_custom_call.1} parent=1 // pred_check
      _
    $region19: #{tpu_custom_call.1} parent=1 // pred_check_branch
      %53 = sbr.rel (0) target = $region21
    $region20: #{tpu_custom_call.1} parent=1 // pred_region
      _
    $region21: #{tpu_custom_call.1} parent=1 // pred_fallthru
      _
    // Predicated region
    $region22: #{tpu_custom_call.1} parent=1 // pred_check
      _
    $region23: #{tpu_custom_call.1} parent=1 // pred_check_branch
      %55 = sbr.rel (0) target = $region25
    $region24: #{tpu_custom_call.1} parent=1 // pred_region
      _
    $region25: #{tpu_custom_call.1} parent=1 // pred_fallthru
      _
    // Predicated region
    $region26: #{tpu_custom_call.1} parent=1 // pred_check
      _
    $region27: #{tpu_custom_call.1} parent=1 // pred_check_branch
      %57 = sbr.rel (0) target = $region29
    $region28: #{tpu_custom_call.1} parent=1 // pred_region
      _
    $region29: #{tpu_custom_call.1} parent=1 // pred_fallthru
      _
    // Predicated region
    $region30: #{tpu_custom_call.1} parent=1 // pred_check
      _
    $region31: #{tpu_custom_call.1} parent=1 // pred_check_branch
      %59 = sbr.rel (0) target = $region33
    $region32: #{tpu_custom_call.1} parent=1 // pred_region
      _
    $region33: #{tpu_custom_call.1} parent=1 // pred_fallthru
      _
    // Predicated region
    $region34: #{tpu_custom_call.1} parent=1 // pred_check
      _
    $region35: #{tpu_custom_call.1} parent=1 // pred_check_branch
      %61 = sbr.rel (0) target = $region37
    $region36: #{tpu_custom_call.1} parent=1 // pred_region
      _
    $region37: #{tpu_custom_call.1} parent=1 // pred_fallthru
      _
    // Predicated region
    $region38: #{tpu_custom_call.1} parent=1 // pred_check
      _
    $region39: #{tpu_custom_call.1} parent=1 // pred_check_branch
      %63 = sbr.rel (0) target = $region41
    $region40: #{tpu_custom_call.1} parent=1 // pred_region
      %64 = dma.done [#allocation3], 128
    $region41: #{tpu_custom_call.1} parent=1 // pred_fallthru
      _
    // Predicated region
    $region42: #{tpu_custom_call.1} parent=1 // pred_check
      _
    $region43: #{tpu_custom_call.1} parent=1 // pred_check_branch
      %66 = sbr.rel (0) target = $region45
    $region44: #{tpu_custom_call.1} parent=1 // pred_region
      %67 = dma.done [#allocation5], 512
    $region45: #{tpu_custom_call.1} parent=1 // pred_fallthru
      _
    // Predicated region
    $region46: #{tpu_custom_call.1} parent=1 // pred_check
      _
    $region47: #{tpu_custom_call.1} parent=1 // pred_check_branch
      %69 = sbr.rel (0) target = $region49
    $region48: #{tpu_custom_call.1} parent=1 // pred_region
      %70 = dma.done [#allocation5], 512
    $region49: #{tpu_custom_call.1} parent=1 // pred_fallthru
      _
    %v71 = vld [vmem:[#allocation4] sm:$0xff]
    %v72 = vld [vmem:[#allocation4 + $0x8] sm:$0xff]
    %v73 = vld [vmem:[#allocation4 + $0x10] sm:$0xff]
    %v74 = vld [vmem:[#allocation4 + $0x18] sm:$0xff]
    %v75 = vld [vmem:[#allocation6] sm:$0xff]
    %v76 = vld [vmem:[#allocation6 + $0x8] sm:$0xff]
    %v77 = vld [vmem:[#allocation6 + $0x10] sm:$0xff]
    %v78 = vld [vmem:[#allocation6 + $0x18] sm:$0xff]
    %v79 = vld [vmem:[%s4] sm:$0x1]
    %v80 = vld [vmem:[%s0] sm:$0xff]
    %v81 = vld [vmem:[#allocation2] sm:$0xff]
    %vm82 = vcmask 261120
    %v84 = vsel %vm82, %v81, 0
    %86 = vmatprep.subr.mxu0 0.0
    %87 = vmatpush1.msra.mxu0 0.0
    %88 = vmatprep.subr.mxu0 0.0
    %89 = vmatpush1.msra.mxu0 0.0
    %90 = vmatprep.subr.mxu0 0.0
    %91 = vmatpush1.msra.mxu0 0.0
    %92 = vmatprep.subr.mxu0 0.0
    %93 = vmatpush1.msra.mxu0 0.0
    %94 = vmatprep.subr.mxu0 0.0
    %95 = vmatpush1.msra.mxu0 0.0
    %96 = vmatprep.subr.mxu0 0.0
    %97 = vmatpush1.msra.mxu0 0.0
    %98 = vmatprep.subr.mxu0 0.0
    %99 = vmatpush1.msra.mxu0 0.0
    %100 = vmatprep.subr.mxu0 0.0
    %101 = vmatpush1.msra.mxu0 0.0
    %102 = vmatprep.subr.mxu0 0.0
    %103 = vmatpush1.msra.mxu0 0.0
    %104 = vmatprep.subr.mxu0 0.0
    %105 = vmatpush1.msra.mxu0 0.0
    %106 = vmatprep.subr.mxu0 0.0
    %107 = vmatpush1.msra.mxu0 0.0
    %108 = vmatprep.subr.mxu0 0.0
    %109 = vmatpush1.msra.mxu0 0.0
    %110 = vmatprep.subr.mxu0 0.0
    %111 = vmatpush1.msra.mxu0 %v78
    %112 = vmatprep.subr.mxu0 0.0
    %113 = vmatpush1.msra.mxu0 %v77
    %114 = vmatprep.subr.mxu0 0.0
    %115 = vmatpush1.msra.mxu0 %v76
    %116 = vmatprep.subr.mxu0 0.0
    %117 = vmatpush1.msra.mxu0 %v75
    %118 = vmatprep.subr.mxu0 0.0
    %119 = vmatpush2.msra.mxu0 0.0
    %120 = vmatprep.subr.mxu0 0.0
    %121 = vmatpush2.msra.mxu0 0.0
    %122 = vmatprep.subr.mxu0 0.0
    %123 = vmatpush2.msra.mxu0 0.0
    %124 = vmatprep.subr.mxu0 0.0
    %125 = vmatpush2.msra.mxu0 0.0
    %126 = vmatprep.subr.mxu0 0.0
    %127 = vmatpush2.msra.mxu0 0.0
    %128 = vmatprep.subr.mxu0 0.0
    %129 = vmatpush2.msra.mxu0 0.0
    %130 = vmatprep.subr.mxu0 0.0
    %131 = vmatpush2.msra.mxu0 0.0
    %132 = vmatprep.subr.mxu0 0.0
    %133 = vmatpush2.msra.mxu0 0.0
    %134 = vmatprep.subr.mxu0 0.0
    %135 = vmatpush2.msra.mxu0 0.0
    %136 = vmatprep.subr.mxu0 0.0
    %137 = vmatpush2.msra.mxu0 0.0
    %138 = vmatprep.subr.mxu0 0.0
    %139 = vmatpush2.msra.mxu0 0.0
    %140 = vmatprep.subr.mxu0 0.0
    %141 = vmatpush2.msra.mxu0 0.0
    %142 = vmatprep.subr.mxu0 0.0
    %143 = vmatpush2.msra.mxu0 0.0
    %144 = vmatprep.subr.mxu0 0.0
    %145 = vmatpush2.msra.mxu0 0.0
    %146 = vmatprep.subr.mxu0 0.0
    %147 = vmatpush2.msra.mxu0 0.0
    %148 = vmatprep.subr.mxu0 0.0
    %149 = vmatpush2.msra.mxu0 0.0
    %150 = vmatprep.mubr.f32.mxu0 0.0
    %151 = vmatmul.mubr.f32.gmra.mxu0 %v84
    %v152 = vpop.f32.mrf.mxu0
    %v153 = vadd.f32 0.0, %v152
    %v154 = vpop.f32.mrf.mxu0
    %155 = vdwg.mxu0
    %v157 = vsel %vm82, %v80, 0
    %159 = vmatprep.subr.mxu0 0.0
    %160 = vmatpush1.msra.mxu0 0.0
    %161 = vmatprep.subr.mxu0 0.0
    %162 = vmatpush1.msra.mxu0 0.0
    %163 = vmatprep.subr.mxu0 0.0
    %164 = vmatpush1.msra.mxu0 0.0
    %165 = vmatprep.subr.mxu0 0.0
    %166 = vmatpush1.msra.mxu0 0.0
    %167 = vmatprep.subr.mxu0 0.0
    %168 = vmatpush1.msra.mxu0 0.0
    %169 = vmatprep.subr.mxu0 0.0
    %170 = vmatpush1.msra.mxu0 0.0
    %171 = vmatprep.subr.mxu0 0.0
    %172 = vmatpush1.msra.mxu0 0.0
    %173 = vmatprep.subr.mxu0 0.0
    %174 = vmatpush1.msra.mxu0 0.0
    %175 = vmatprep.subr.mxu0 0.0
    %176 = vmatpush1.msra.mxu0 0.0
    %177 = vmatprep.subr.mxu0 0.0
    %178 = vmatpush1.msra.mxu0 0.0
    %179 = vmatprep.subr.mxu0 0.0
    %180 = vmatpush1.msra.mxu0 0.0
    %181 = vmatprep.subr.mxu0 0.0
    %182 = vmatpush1.msra.mxu0 0.0
    %183 = vmatprep.subr.mxu0 0.0
    %184 = vmatpush1.msra.mxu0 %v74
    %185 = vmatprep.subr.mxu0 0.0
    %186 = vmatpush1.msra.mxu0 %v73
    %187 = vmatprep.subr.mxu0 0.0
    %188 = vmatpush1.msra.mxu0 %v72
    %189 = vmatprep.subr.mxu0 0.0
    %190 = vmatpush1.msra.mxu0 %v71
    %191 = vmatprep.subr.mxu0 0.0
    %192 = vmatpush2.msra.mxu0 0.0
    %193 = vmatprep.subr.mxu0 0.0
    %194 = vmatpush2.msra.mxu0 0.0
    %195 = vmatprep.subr.mxu0 0.0
    %196 = vmatpush2.msra.mxu0 0.0
    %197 = vmatprep.subr.mxu0 0.0
    %198 = vmatpush2.msra.mxu0 0.0
    %199 = vmatprep.subr.mxu0 0.0
    %200 = vmatpush2.msra.mxu0 0.0
    %201 = vmatprep.subr.mxu0 0.0
    %202 = vmatpush2.msra.mxu0 0.0
    %203 = vmatprep.subr.mxu0 0.0
    %204 = vmatpush2.msra.mxu0 0.0
    %205 = vmatprep.subr.mxu0 0.0
    %206 = vmatpush2.msra.mxu0 0.0
    %207 = vmatprep.subr.mxu0 0.0
    %208 = vmatpush2.msra.mxu0 0.0
    %209 = vmatprep.subr.mxu0 0.0
    %210 = vmatpush2.msra.mxu0 0.0
    %211 = vmatprep.subr.mxu0 0.0
    %212 = vmatpush2.msra.mxu0 0.0
    %213 = vmatprep.subr.mxu0 0.0
    %214 = vmatpush2.msra.mxu0 0.0
    %215 = vmatprep.subr.mxu0 0.0
    %216 = vmatpush2.msra.mxu0 0.0
    %217 = vmatprep.subr.mxu0 0.0
    %218 = vmatpush2.msra.mxu0 0.0
    %219 = vmatprep.subr.mxu0 0.0
    %220 = vmatpush2.msra.mxu0 0.0
    %221 = vmatprep.subr.mxu0 0.0
    %222 = vmatpush2.msra.mxu0 0.0
    %223 = vmatprep.mubr.f32.mxu0 0.0
    %224 = vmatmul.mubr.f32.gmra.mxu0 %v157
    %v225 = vpop.f32.mrf.mxu0
    %v226 = vadd.f32 %v153, %v225
    %v227 = vpop.f32.mrf.mxu0
    %228 = vdwg.mxu0
    %v230 = vlaneseq
    %v231 = vshrl.u32 %v230, 7
    %v232 = vsub.s32 0, %v231
    %v233 = vrot.slane %v79, %v232
    %v235 = vadd.f32 %v226, %v233
    %v236 = vmax.f32 %v235, 0.0
    %v237 = vld [vmem:[%s5] sm:$0xff]
    %v238 = vld [vmem:[%s5 + $0x8] sm:$0xff]
    %v239 = vld [vmem:[%s5 + $0x10] sm:$0xff]
    %v240 = vld [vmem:[%s5 + $0x18] sm:$0xff]
    %v241 = vld [vmem:[%s5 + $0x20] sm:$0xff]
    %v242 = vld [vmem:[%s5 + $0x28] sm:$0xff]
    %v243 = vld [vmem:[%s5 + $0x30] sm:$0xff]
    %v244 = vld [vmem:[%s5 + $0x38] sm:$0xff]
    %v245 = vld [vmem:[%s6] sm:$0x1]
    %v247 = vlaneseq
    %v248 = vshrl.u32 %v247, 7
    %v249 = vsub.s32 0, %v248
    %v250 = vrot.slane %v245, %v249
    %vm252 = vcmask 523264
    %v254 = vsel %vm252, %v236, 0
    %256 = vmatprep.subr.mxu0 0.0
    %257 = vmatpush1.msra.mxu0 0.0
    %258 = vmatprep.subr.mxu0 0.0
    %259 = vmatpush1.msra.mxu0 0.0
    %260 = vmatprep.subr.mxu0 0.0
    %261 = vmatpush1.msra.mxu0 0.0
    %262 = vmatprep.subr.mxu0 0.0
    %263 = vmatpush1.msra.mxu0 0.0
    %264 = vmatprep.subr.mxu0 0.0
    %265 = vmatpush1.msra.mxu0 0.0
    %266 = vmatprep.subr.mxu0 0.0
    %267 = vmatpush1.msra.mxu0 0.0
    %268 = vmatprep.subr.mxu0 0.0
    %269 = vmatpush1.msra.mxu0 0.0
    %270 = vmatprep.subr.mxu0 0.0
    %271 = vmatpush1.msra.mxu0 0.0
    %272 = vmatprep.subr.mxu0 0.0
    %273 = vmatpush1.msra.mxu0 %v244
    %274 = vmatprep.subr.mxu0 0.0
    %275 = vmatpush1.msra.mxu0 %v243
    %276 = vmatprep.subr.mxu0 0.0
    %277 = vmatpush1.msra.mxu0 %v242
    %278 = vmatprep.subr.mxu0 0.0
    %279 = vmatpush1.msra.mxu0 %v241
    %280 = vmatprep.subr.mxu0 0.0
    %281 = vmatpush1.msra.mxu0 %v240
    %282 = vmatprep.subr.mxu0 0.0
    %283 = vmatpush1.msra.mxu0 %v239
    %284 = vmatprep.subr.mxu0 0.0
    %285 = vmatpush1.msra.mxu0 %v238
    %286 = vmatprep.subr.mxu0 0.0
    %287 = vmatpush1.msra.mxu0 %v237
    %288 = vmatprep.subr.mxu0 0.0
    %289 = vmatpush2.msra.mxu0 0.0
    %290 = vmatprep.subr.mxu0 0.0
    %291 = vmatpush2.msra.mxu0 0.0
    %292 = vmatprep.subr.mxu0 0.0
    %293 = vmatpush2.msra.mxu0 0.0
    %294 = vmatprep.subr.mxu0 0.0
    %295 = vmatpush2.msra.mxu0 0.0
    %296 = vmatprep.subr.mxu0 0.0
    %297 = vmatpush2.msra.mxu0 0.0
    %298 = vmatprep.subr.mxu0 0.0
    %299 = vmatpush2.msra.mxu0 0.0
    %300 = vmatprep.subr.mxu0 0.0
    %301 = vmatpush2.msra.mxu0 0.0
    %302 = vmatprep.subr.mxu0 0.0
    %303 = vmatpush2.msra.mxu0 0.0
    %304 = vmatprep.subr.mxu0 0.0
    %305 = vmatpush2.msra.mxu0 0.0
    %306 = vmatprep.subr.mxu0 0.0
    %307 = vmatpush2.msra.mxu0 0.0
    %308 = vmatprep.subr.mxu0 0.0
    %309 = vmatpush2.msra.mxu0 0.0
    %310 = vmatprep.subr.mxu0 0.0
    %311 = vmatpush2.msra.mxu0 0.0
    %312 = vmatprep.subr.mxu0 0.0
    %313 = vmatpush2.msra.mxu0 0.0
    %314 = vmatprep.subr.mxu0 0.0
    %315 = vmatpush2.msra.mxu0 0.0
    %316 = vmatprep.subr.mxu0 0.0
    %317 = vmatpush2.msra.mxu0 0.0
    %318 = vmatprep.subr.mxu0 0.0
    %319 = vmatpush2.msra.mxu0 0.0
    %320 = vmatprep.mubr.f32.mxu0 0.0
    %321 = vmatmul.mubr.f32.gmra.mxu0 %v254
    %v322 = vpop.f32.mrf.mxu0
    %v323 = vadd.f32 %v250, %v322
    %v324 = vpop.f32.mrf.mxu0
    %325 = vdwg.mxu0
    %v326 = vmax.f32 %v323, 0.0
    %v327 = vld [vmem:[%s7] sm:$0xff]
    %v328 = vld [vmem:[%s7 + $0x8] sm:$0xff]
    %v329 = vld [vmem:[%s7 + $0x10] sm:$0xff]
    %v330 = vld [vmem:[%s7 + $0x18] sm:$0xff]
    %v331 = vld [vmem:[%s7 + $0x20] sm:$0xff]
    %v332 = vld [vmem:[%s7 + $0x28] sm:$0xff]
    %v333 = vld [vmem:[%s7 + $0x30] sm:$0xff]
    %v334 = vld [vmem:[%s7 + $0x38] sm:$0xff]
    %v335 = vld [vmem:[%s8] sm:$0x1]
    %v337 = vlaneseq
    %v338 = vshrl.u32 %v337, 7
    %v339 = vsub.s32 0, %v338
    %v340 = vrot.slane %v335, %v339
    %v343 = vsel %vm252, %v326, 0
    %345 = vmatprep.subr.mxu0 0.0
    %346 = vmatpush1.msra.mxu0 0.0
    %347 = vmatprep.subr.mxu0 0.0
    %348 = vmatpush1.msra.mxu0 0.0
    %349 = vmatprep.subr.mxu0 0.0
    %350 = vmatpush1.msra.mxu0 0.0
    %351 = vmatprep.subr.mxu0 0.0
    %352 = vmatpush1.msra.mxu0 0.0
    %353 = vmatprep.subr.mxu0 0.0
    %354 = vmatpush1.msra.mxu0 0.0
    %355 = vmatprep.subr.mxu0 0.0
    %356 = vmatpush1.msra.mxu0 0.0
    %357 = vmatprep.subr.mxu0 0.0
    %358 = vmatpush1.msra.mxu0 0.0
    %359 = vmatprep.subr.mxu0 0.0
    %360 = vmatpush1.msra.mxu0 0.0
    %361 = vmatprep.subr.mxu0 0.0
    %362 = vmatpush1.msra.mxu0 %v334
    %363 = vmatprep.subr.mxu0 0.0
    %364 = vmatpush1.msra.mxu0 %v333
    %365 = vmatprep.subr.mxu0 0.0
    %366 = vmatpush1.msra.mxu0 %v332
    %367 = vmatprep.subr.mxu0 0.0
    %368 = vmatpush1.msra.mxu0 %v331
    %369 = vmatprep.subr.mxu0 0.0
    %370 = vmatpush1.msra.mxu0 %v330
    %371 = vmatprep.subr.mxu0 0.0
    %372 = vmatpush1.msra.mxu0 %v329
    %373 = vmatprep.subr.mxu0 0.0
    %374 = vmatpush1.msra.mxu0 %v328
    %375 = vmatprep.subr.mxu0 0.0
    %376 = vmatpush1.msra.mxu0 %v327
    %377 = vmatprep.subr.mxu0 0.0
    %378 = vmatpush2.msra.mxu0 0.0
    %379 = vmatprep.subr.mxu0 0.0
    %380 = vmatpush2.msra.mxu0 0.0
    %381 = vmatprep.subr.mxu0 0.0
    %382 = vmatpush2.msra.mxu0 0.0
    %383 = vmatprep.subr.mxu0 0.0
    %384 = vmatpush2.msra.mxu0 0.0
    %385 = vmatprep.subr.mxu0 0.0
    %386 = vmatpush2.msra.mxu0 0.0
    %387 = vmatprep.subr.mxu0 0.0
    %388 = vmatpush2.msra.mxu0 0.0
    %389 = vmatprep.subr.mxu0 0.0
    %390 = vmatpush2.msra.mxu0 0.0
    %391 = vmatprep.subr.mxu0 0.0
    %392 = vmatpush2.msra.mxu0 0.0
    %393 = vmatprep.subr.mxu0 0.0
    %394 = vmatpush2.msra.mxu0 0.0
    %395 = vmatprep.subr.mxu0 0.0
    %396 = vmatpush2.msra.mxu0 0.0
    %397 = vmatprep.subr.mxu0 0.0
    %398 = vmatpush2.msra.mxu0 0.0
    %399 = vmatprep.subr.mxu0 0.0
    %400 = vmatpush2.msra.mxu0 0.0
    %401 = vmatprep.subr.mxu0 0.0
    %402 = vmatpush2.msra.mxu0 0.0
    %403 = vmatprep.subr.mxu0 0.0
    %404 = vmatpush2.msra.mxu0 0.0
    %405 = vmatprep.subr.mxu0 0.0
    %406 = vmatpush2.msra.mxu0 0.0
    %407 = vmatprep.subr.mxu0 0.0
    %408 = vmatpush2.msra.mxu0 0.0
    %409 = vmatprep.mubr.f32.mxu0 0.0
    %410 = vmatmul.mubr.f32.gmra.mxu0 %v343
    %v411 = vpop.f32.mrf.mxu0
    %v412 = vadd.f32 %v340, %v411
    %v413 = vpop.f32.mrf.mxu0
    %414 = vdwg.mxu0
    %v415 = vmul.f32 %v412, %v412
    %vm416 = vcmask 64512
    %v417 = vsel %vm416, %v415, 0.0
    %418 = vadd.xlane.f32.xlu0 %v417
    %v419 = vpop.xlane.xlu0 %418
    %v420 = vrsqrt.pop %v419
    %v421 = vmul.f32 %v419, %v420
    %vm422 = vcmp.eq.f32.partialorder %v419, inf
    %v423 = vsel %vm422, %v419, %v421
    %vm424 = vcmp.eq.f32.partialorder %v419, 0.0
    %v425 = vand.u32 %v419, 2147483648
    %v426 = vsel %vm424, %v425, %v423
    %vm427 = vcmask 7168
    %428 = vst.msk [vmem:[%s9] sm:$0xff] %vm427, %v426
    // Predicated region
    $region50: #{tpu_custom_call.1} parent=1 // pred_check
      _
    $region51: #{tpu_custom_call.1} parent=1 // pred_check_branch
      %430 = sbr.rel (0) target = $region53
    $region52: #{tpu_custom_call.1} parent=1 // pred_region
      _
    $region53: #{tpu_custom_call.1} parent=1 // pred_fallthru
      _
    // Predicated region
    $region54: #{tpu_custom_call.1} parent=1 // pred_check
      _
    $region55: #{tpu_custom_call.1} parent=1 // pred_check_branch
      %432 = sbr.rel (0) target = $region57
    $region56: #{tpu_custom_call.1} parent=1 // pred_region
      _
    $region57: #{tpu_custom_call.1} parent=1 // pred_fallthru
      _
    %433 = vsyncpa [#allocation3], 1
    %434 = vsyncpa [#allocation5], 1

</llo_original>
